<compile_context>
chip_gen: v6e
topology: v6e:2x2x1
jax: 0.10.0
libtpu: 0.0.40
codegen_flags: <defaults>
</compile_context>

<pallas_src>
import jax
import jax.numpy as jnp
from jax.experimental import pallas as pl
from jax.experimental.pallas import tpu as pltpu


def _round_up(x, m):
    return (x + m - 1) // m * m


def _pick_tile(padded, unit, cap):
    """Largest multiple-of-`unit` divisor of `padded` that is <= cap."""
    best = unit
    t = unit
    while t <= min(padded, cap):
        if padded % t == 0:
            best = t
        t += unit
    return best


def pr_kernel(ue_ref, it_ref, wr_ref, alpha_ref, mask_ref, out_ref):
    """One (TB, TL) output tile.

    ue:    (D, TB, 1)  bf16   user embedding (D on the leading axis)
    it:    (D, TB, TL) bf16   item embeddings, each d-slab (TB, TL) tile-dense
    wr / alpha / mask / out: (TB, TL) f32, lane/sublane dense
    """
    d_total = it_ref.shape[0]

    # w_mul = alpha * w[r]  (VPU, f32 -- v5e has no bf16 VPU)
    acc = alpha_ref[...] * wr_ref[...]                    # (TB, TL) f32

    # emb_sim = sum_d u_e[d] * i_e[d]: D unrolled FMA slabs with f32
    # accumulation.  Everything stays (TB, TL) tile-dense, so there is no
    # M=1 MXU push/pop, no cross-lane work and no relayout anywhere.
    for d in range(d_total):
        u_d = ue_ref[d].astype(jnp.float32)               # (TB, 1) -> lane splat
        i_d = it_ref[d].astype(jnp.float32)               # (TB, TL)
        acc = acc + u_d * i_d

    out_ref[...] = acc * mask_ref[...]                    # full-width store


def pr_network_forward(u, r, r_mask, alpha, params, *,
                       tb_max=16, tl_max=1024, emb_dtype=jnp.bfloat16):
    """Gathers (XLA glue) + one tiled, double-buffered Pallas call."""
    user_emb = params["user_emb"]   # (n_users, D) f32
    item_emb = params["item_emb"]   # (n_items, D) f32
    w = params["w"]                 # (1, n_items) f32

    B, L = r.shape
    D = user_emb.shape[1]

    # --- tiling: lane-dense L, sublane-dense B, no L-padding waste ---
    B_pad = _round_up(B, 8)
    L_pad = _round_up(L, 128)             # pad to a lane multiple first ...
    TB = _pick_tile(B_pad, 8, tb_max)
    TL = _pick_tile(L_pad, 128, tl_max)   # ... then TL = divisor of L_pad
    if B_pad == TB and L_pad == TL and L_pad >= 256:
        # keep >=2 blocks on a parallel axis so both v7x TensorCores get work
        TL = _pick_tile(L_pad, 128, L_pad // 2)

    # --- pad the small (B, L) streams; index-0 pads hit the zero padding rows,
    #     and padded positions are masked / sliced off anyway ---
    r_p = jnp.pad(r, ((0, B_pad - B), (0, L_pad - L)))
    u_p = jnp.pad(u, ((0, B_pad - B), (0, 0)))
    alpha_p = jnp.pad(alpha.astype(jnp.float32),
                      ((0, B_pad - B), (0, L_pad - L)))
    mask_p = jnp.pad(r_mask.astype(jnp.float32),
                     ((0, B_pad - B), (0, L_pad - L)))

    # --- gathers (XLA glue, see TODO(synk) at top) ---
    # bf16 MXU/VPU operands halve the dominant (B, L, D) stream; the
    # contraction still accumulates in f32 inside the kernel.
    user_emb_t = user_emb.astype(emb_dtype).T            # (D, n_users) -- tiny
    item_emb_t = item_emb.astype(emb_dtype).T            # (D, n_items) -- tiny
    # i_e lands directly in (D, B, L) layout: no separate transpose pass and
    # every kernel d-slab is (TB, TL) tile-dense.
    i_t = item_emb_t[:, r_p]                              # (D, B_pad, L_pad) bf16
    u_t = user_emb_t[:, u_p[:, 0]][:, :, None]            # (D, B_pad, 1)     bf16
    w_r = w[0, r_p]                                       # (B_pad, L_pad)    f32

    grid = (B_pad // TB, L_pad // TL)

    out = pl.pallas_call(
        pr_kernel,
        out_shape=jax.ShapeDtypeStruct((B_pad, L_pad), jnp.float32),
        grid_spec=pltpu.PrefetchScalarGridSpec(
            num_scalar_prefetch=0,
            grid=grid,
            in_specs=[
                pl.BlockSpec((D, TB, 1), lambda b, lt: (0, b, 0)),    # u_t
                pl.BlockSpec((D, TB, TL), lambda b, lt: (0, b, lt)),  # i_t
                pl.BlockSpec((TB, TL), lambda b, lt: (b, lt)),        # w_r
                pl.BlockSpec((TB, TL), lambda b, lt: (b, lt)),        # alpha
                pl.BlockSpec((TB, TL), lambda b, lt: (b, lt)),        # mask
            ],
            out_specs=pl.BlockSpec((TB, TL), lambda b, lt: (b, lt)),
        ),
        compiler_params=pltpu.CompilerParams(
            dimension_semantics=("parallel", "parallel"),
            vmem_limit_bytes=48 * 1024 * 1024,
            # let XLA fuse the gather producers into the kernel inputs instead
            # of materializing them in HBM first
            allow_input_fusion=[True] * 5,
        ),
    )(u_t, i_t, w_r, alpha_p, mask_p)

    return out[:B, :L]


def init_params(key, n_users, n_items, emb_dim=32):
    k1, k2, k3 = jax.random.split(key, 3)
    user_emb = jax.random.normal(k1, (n_users, emb_dim), jnp.float32)
    item_emb = jax.random.normal(k2, (n_items, emb_dim), jnp.float32)
    # padding_idx=0 -> row 0 is zeros (matches nn.Embedding(padding_idx=0))
    user_emb = user_emb.at[0].set(0.0)
    item_emb = item_emb.at[0].set(0.0)
    w = jax.random.normal(k3, (1, n_items), jnp.float32)
    return {"user_emb": user_emb, "item_emb": item_emb, "w": w}


def reference_forward(u, r, r_mask, alpha, params, emb_dtype=jnp.float32):
    """Pure-JAX reference mirroring the PyTorch module (optionally applying the
    same bf16 embedding cast the kernel path uses)."""
    user_emb = params["user_emb"].astype(emb_dtype).astype(jnp.float32)
    item_emb = params["item_emb"].astype(emb_dtype).astype(jnp.float32)
    u_e = user_emb[u[:, 0]]                         # (B, D)
    i_e = item_emb[r]                               # (B, L, D)
    w_mul = alpha.astype(jnp.float32) * params["w"][0, r]
    emb_sim = jnp.einsum("bd,bld->bl", u_e, i_e,
                         precision=jax.lax.Precision.HIGHEST)
    return (w_mul + emb_sim) * r_mask.astype(jnp.float32)


if __name__ == "__main__":
    n_users, n_items, emb_dim = 10, 12, 32
    B, L = 2, 8

    key = jax.random.PRNGKey(0)
    kp, ku, kr, ka = jax.random.split(key, 4)

    params = init_params(kp, n_users, n_items, emb_dim)

    u = jax.random.randint(ku, (B, 1), 1, n_users, dtype=jnp.int32)
    r = jax.random.randint(kr, (B, L), 0, n_items, dtype=jnp.int32)
    r_mask = (r != 0).astype(jnp.int32)
    alpha = jax.random.uniform(ka, (B, L), dtype=jnp.float32)

    fwd = jax.jit(pr_network_forward)
    out = jax.block_until_ready(fwd(u, r, r_mask, alpha, params))

    assert out.shape == (B, L)

    # tight check against a reference using the same bf16 embedding cast
    ref_bf16 = reference_forward(u, r, r_mask, alpha, params,
                                 emb_dtype=jnp.bfloat16)
    assert jnp.allclose(out, ref_bf16, atol=1e-3, rtol=1e-3), \
        "mismatch vs bf16-consistent reference"

    # loose check against the full-f32 module reference (bf16 embeddings
    # deliberately trade mantissa bits for HBM bandwidth)
    ref_f32 = reference_forward(u, r, r_mask, alpha, params)
    assert jnp.allclose(out, ref_f32, atol=2.5e-1, rtol=5e-2), \
        "mismatch vs f32 reference"

    print("KERNEL_OK")
</pallas_src>

<mosaic_0001>
module attributes {stable_mosaic.version = 11 : i64} {
  func.func @pr_kernel(%arg0: i32, %arg1: i32, %arg2: memref<32x8x1xbf16, #tpu.memory_space<vmem>>, %arg3: memref<32x8x128xbf16, #tpu.memory_space<vmem>>, %arg4: memref<8x128xf32, #tpu.memory_space<vmem>>, %arg5: memref<8x128xf32, #tpu.memory_space<vmem>>, %arg6: memref<8x128xf32, #tpu.memory_space<vmem>>, %arg7: memref<8x128xf32, #tpu.memory_space<vmem>>) attributes {dimension_semantics = [#tpu.dimension_semantics<parallel>, #tpu.dimension_semantics<parallel>], iteration_bounds = array<i64: 1, 1>, scalar_prefetch = 0 : i64, scratch_operands = 0 : i64, tpu.core_type = #tpu.core_type<tc>, window_params = [{transform_indices = @transform_0, window_bounds = array<i64: 32, 8, 1>}, {transform_indices = @transform_1, window_bounds = array<i64: 32, 8, 128>}, {transform_indices = @transform_2, window_bounds = array<i64: 8, 128>}, {transform_indices = @transform_3, window_bounds = array<i64: 8, 128>}, {transform_indices = @transform_4, window_bounds = array<i64: 8, 128>}, {transform_indices = @transform_5, window_bounds = array<i64: 8, 128>}]} {
    %c0 = arith.constant 0 : index
    %c0_0 = arith.constant 0 : index
    %0 = vector.load %arg5[%c0, %c0_0] : memref<8x128xf32, #tpu.memory_space<vmem>>, vector<8x128xf32>
    %c0_1 = arith.constant 0 : index
    %c0_2 = arith.constant 0 : index
    %1 = vector.load %arg4[%c0_1, %c0_2] : memref<8x128xf32, #tpu.memory_space<vmem>>, vector<8x128xf32>
    %2 = arith.mulf %0, %1 : vector<8x128xf32>
    %c0_3 = arith.constant 0 : index
    %c0_4 = arith.constant 0 : index
    %c0_5 = arith.constant 0 : index
    %3 = vector.load %arg2[%c0_3, %c0_4, %c0_5] : memref<32x8x1xbf16, #tpu.memory_space<vmem>>, vector<1x8x1xbf16>
    %4 = vector.shape_cast %3 : vector<1x8x1xbf16> to vector<8x1xbf16>
    %5 = arith.extf %4 : vector<8x1xbf16> to vector<8x1xf32>
    %c0_6 = arith.constant 0 : index
    %c0_7 = arith.constant 0 : index
    %c0_8 = arith.constant 0 : index
    %6 = vector.load %arg3[%c0_6, %c0_7, %c0_8] : memref<32x8x128xbf16, #tpu.memory_space<vmem>>, vector<1x8x128xbf16>
    %7 = vector.shape_cast %6 : vector<1x8x128xbf16> to vector<8x128xbf16>
    %8 = arith.extf %7 : vector<8x128xbf16> to vector<8x128xf32>
    %9 = vector.broadcast %5 : vector<8x1xf32> to vector<8x128xf32>
    %10 = arith.mulf %9, %8 : vector<8x128xf32>
    %11 = arith.addf %2, %10 : vector<8x128xf32>
    %c1 = arith.constant 1 : index
    %c0_9 = arith.constant 0 : index
    %c0_10 = arith.constant 0 : index
    %12 = vector.load %arg2[%c1, %c0_9, %c0_10] : memref<32x8x1xbf16, #tpu.memory_space<vmem>>, vector<1x8x1xbf16>
    %13 = vector.shape_cast %12 : vector<1x8x1xbf16> to vector<8x1xbf16>
    %14 = arith.extf %13 : vector<8x1xbf16> to vector<8x1xf32>
    %c1_11 = arith.constant 1 : index
    %c0_12 = arith.constant 0 : index
    %c0_13 = arith.constant 0 : index
    %15 = vector.load %arg3[%c1_11, %c0_12, %c0_13] : memref<32x8x128xbf16, #tpu.memory_space<vmem>>, vector<1x8x128xbf16>
    %16 = vector.shape_cast %15 : vector<1x8x128xbf16> to vector<8x128xbf16>
    %17 = arith.extf %16 : vector<8x128xbf16> to vector<8x128xf32>
    %18 = vector.broadcast %14 : vector<8x1xf32> to vector<8x128xf32>
    %19 = arith.mulf %18, %17 : vector<8x128xf32>
    %20 = arith.addf %11, %19 : vector<8x128xf32>
    %c2 = arith.constant 2 : index
    %c0_14 = arith.constant 0 : index
    %c0_15 = arith.constant 0 : index
    %21 = vector.load %arg2[%c2, %c0_14, %c0_15] : memref<32x8x1xbf16, #tpu.memory_space<vmem>>, vector<1x8x1xbf16>
    %22 = vector.shape_cast %21 : vector<1x8x1xbf16> to vector<8x1xbf16>
    %23 = arith.extf %22 : vector<8x1xbf16> to vector<8x1xf32>
    %c2_16 = arith.constant 2 : index
    %c0_17 = arith.constant 0 : index
    %c0_18 = arith.constant 0 : index
    %24 = vector.load %arg3[%c2_16, %c0_17, %c0_18] : memref<32x8x128xbf16, #tpu.memory_space<vmem>>, vector<1x8x128xbf16>
    %25 = vector.shape_cast %24 : vector<1x8x128xbf16> to vector<8x128xbf16>
    %26 = arith.extf %25 : vector<8x128xbf16> to vector<8x128xf32>
    %27 = vector.broadcast %23 : vector<8x1xf32> to vector<8x128xf32>
    %28 = arith.mulf %27, %26 : vector<8x128xf32>
    %29 = arith.addf %20, %28 : vector<8x128xf32>
    %c3 = arith.constant 3 : index
    %c0_19 = arith.constant 0 : index
    %c0_20 = arith.constant 0 : index
    %30 = vector.load %arg2[%c3, %c0_19, %c0_20] : memref<32x8x1xbf16, #tpu.memory_space<vmem>>, vector<1x8x1xbf16>
    %31 = vector.shape_cast %30 : vector<1x8x1xbf16> to vector<8x1xbf16>
    %32 = arith.extf %31 : vector<8x1xbf16> to vector<8x1xf32>
    %c3_21 = arith.constant 3 : index
    %c0_22 = arith.constant 0 : index
    %c0_23 = arith.constant 0 : index
    %33 = vector.load %arg3[%c3_21, %c0_22, %c0_23] : memref<32x8x128xbf16, #tpu.memory_space<vmem>>, vector<1x8x128xbf16>
    %34 = vector.shape_cast %33 : vector<1x8x128xbf16> to vector<8x128xbf16>
    %35 = arith.extf %34 : vector<8x128xbf16> to vector<8x128xf32>
    %36 = vector.broadcast %32 : vector<8x1xf32> to vector<8x128xf32>
    %37 = arith.mulf %36, %35 : vector<8x128xf32>
    %38 = arith.addf %29, %37 : vector<8x128xf32>
    %c4 = arith.constant 4 : index
    %c0_24 = arith.constant 0 : index
    %c0_25 = arith.constant 0 : index
    %39 = vector.load %arg2[%c4, %c0_24, %c0_25] : memref<32x8x1xbf16, #tpu.memory_space<vmem>>, vector<1x8x1xbf16>
    %40 = vector.shape_cast %39 : vector<1x8x1xbf16> to vector<8x1xbf16>
    %41 = arith.extf %40 : vector<8x1xbf16> to vector<8x1xf32>
    %c4_26 = arith.constant 4 : index
    %c0_27 = arith.constant 0 : index
    %c0_28 = arith.constant 0 : index
    %42 = vector.load %arg3[%c4_26, %c0_27, %c0_28] : memref<32x8x128xbf16, #tpu.memory_space<vmem>>, vector<1x8x128xbf16>
    %43 = vector.shape_cast %42 : vector<1x8x128xbf16> to vector<8x128xbf16>
    %44 = arith.extf %43 : vector<8x128xbf16> to vector<8x128xf32>
    %45 = vector.broadcast %41 : vector<8x1xf32> to vector<8x128xf32>
    %46 = arith.mulf %45, %44 : vector<8x128xf32>
    %47 = arith.addf %38, %46 : vector<8x128xf32>
    %c5 = arith.constant 5 : index
    %c0_29 = arith.constant 0 : index
    %c0_30 = arith.constant 0 : index
    %48 = vector.load %arg2[%c5, %c0_29, %c0_30] : memref<32x8x1xbf16, #tpu.memory_space<vmem>>, vector<1x8x1xbf16>
    %49 = vector.shape_cast %48 : vector<1x8x1xbf16> to vector<8x1xbf16>
    %50 = arith.extf %49 : vector<8x1xbf16> to vector<8x1xf32>
    %c5_31 = arith.constant 5 : index
    %c0_32 = arith.constant 0 : index
    %c0_33 = arith.constant 0 : index
    %51 = vector.load %arg3[%c5_31, %c0_32, %c0_33] : memref<32x8x128xbf16, #tpu.memory_space<vmem>>, vector<1x8x128xbf16>
    %52 = vector.shape_cast %51 : vector<1x8x128xbf16> to vector<8x128xbf16>
    %53 = arith.extf %52 : vector<8x128xbf16> to vector<8x128xf32>
    %54 = vector.broadcast %50 : vector<8x1xf32> to vector<8x128xf32>
    %55 = arith.mulf %54, %53 : vector<8x128xf32>
    %56 = arith.addf %47, %55 : vector<8x128xf32>
    %c6 = arith.constant 6 : index
    %c0_34 = arith.constant 0 : index
    %c0_35 = arith.constant 0 : index
    %57 = vector.load %arg2[%c6, %c0_34, %c0_35] : memref<32x8x1xbf16, #tpu.memory_space<vmem>>, vector<1x8x1xbf16>
    %58 = vector.shape_cast %57 : vector<1x8x1xbf16> to vector<8x1xbf16>
    %59 = arith.extf %58 : vector<8x1xbf16> to vector<8x1xf32>
    %c6_36 = arith.constant 6 : index
    %c0_37 = arith.constant 0 : index
    %c0_38 = arith.constant 0 : index
    %60 = vector.load %arg3[%c6_36, %c0_37, %c0_38] : memref<32x8x128xbf16, #tpu.memory_space<vmem>>, vector<1x8x128xbf16>
    %61 = vector.shape_cast %60 : vector<1x8x128xbf16> to vector<8x128xbf16>
    %62 = arith.extf %61 : vector<8x128xbf16> to vector<8x128xf32>
    %63 = vector.broadcast %59 : vector<8x1xf32> to vector<8x128xf32>
    %64 = arith.mulf %63, %62 : vector<8x128xf32>
    %65 = arith.addf %56, %64 : vector<8x128xf32>
    %c7 = arith.constant 7 : index
    %c0_39 = arith.constant 0 : index
    %c0_40 = arith.constant 0 : index
    %66 = vector.load %arg2[%c7, %c0_39, %c0_40] : memref<32x8x1xbf16, #tpu.memory_space<vmem>>, vector<1x8x1xbf16>
    %67 = vector.shape_cast %66 : vector<1x8x1xbf16> to vector<8x1xbf16>
    %68 = arith.extf %67 : vector<8x1xbf16> to vector<8x1xf32>
    %c7_41 = arith.constant 7 : index
    %c0_42 = arith.constant 0 : index
    %c0_43 = arith.constant 0 : index
    %69 = vector.load %arg3[%c7_41, %c0_42, %c0_43] : memref<32x8x128xbf16, #tpu.memory_space<vmem>>, vector<1x8x128xbf16>
    %70 = vector.shape_cast %69 : vector<1x8x128xbf16> to vector<8x128xbf16>
    %71 = arith.extf %70 : vector<8x128xbf16> to vector<8x128xf32>
    %72 = vector.broadcast %68 : vector<8x1xf32> to vector<8x128xf32>
    %73 = arith.mulf %72, %71 : vector<8x128xf32>
    %74 = arith.addf %65, %73 : vector<8x128xf32>
    %c8 = arith.constant 8 : index
    %c0_44 = arith.constant 0 : index
    %c0_45 = arith.constant 0 : index
    %75 = vector.load %arg2[%c8, %c0_44, %c0_45] : memref<32x8x1xbf16, #tpu.memory_space<vmem>>, vector<1x8x1xbf16>
    %76 = vector.shape_cast %75 : vector<1x8x1xbf16> to vector<8x1xbf16>
    %77 = arith.extf %76 : vector<8x1xbf16> to vector<8x1xf32>
    %c8_46 = arith.constant 8 : index
    %c0_47 = arith.constant 0 : index
    %c0_48 = arith.constant 0 : index
    %78 = vector.load %arg3[%c8_46, %c0_47, %c0_48] : memref<32x8x128xbf16, #tpu.memory_space<vmem>>, vector<1x8x128xbf16>
    %79 = vector.shape_cast %78 : vector<1x8x128xbf16> to vector<8x128xbf16>
    %80 = arith.extf %79 : vector<8x128xbf16> to vector<8x128xf32>
    %81 = vector.broadcast %77 : vector<8x1xf32> to vector<8x128xf32>
    %82 = arith.mulf %81, %80 : vector<8x128xf32>
    %83 = arith.addf %74, %82 : vector<8x128xf32>
    %c9 = arith.constant 9 : index
    %c0_49 = arith.constant 0 : index
    %c0_50 = arith.constant 0 : index
    %84 = vector.load %arg2[%c9, %c0_49, %c0_50] : memref<32x8x1xbf16, #tpu.memory_space<vmem>>, vector<1x8x1xbf16>
    %85 = vector.shape_cast %84 : vector<1x8x1xbf16> to vector<8x1xbf16>
    %86 = arith.extf %85 : vector<8x1xbf16> to vector<8x1xf32>
    %c9_51 = arith.constant 9 : index
    %c0_52 = arith.constant 0 : index
    %c0_53 = arith.constant 0 : index
    %87 = vector.load %arg3[%c9_51, %c0_52, %c0_53] : memref<32x8x128xbf16, #tpu.memory_space<vmem>>, vector<1x8x128xbf16>
    %88 = vector.shape_cast %87 : vector<1x8x128xbf16> to vector<8x128xbf16>
    %89 = arith.extf %88 : vector<8x128xbf16> to vector<8x128xf32>
    %90 = vector.broadcast %86 : vector<8x1xf32> to vector<8x128xf32>
    %91 = arith.mulf %90, %89 : vector<8x128xf32>
    %92 = arith.addf %83, %91 : vector<8x128xf32>
    %c10 = arith.constant 10 : index
    %c0_54 = arith.constant 0 : index
    %c0_55 = arith.constant 0 : index
    %93 = vector.load %arg2[%c10, %c0_54, %c0_55] : memref<32x8x1xbf16, #tpu.memory_space<vmem>>, vector<1x8x1xbf16>
    %94 = vector.shape_cast %93 : vector<1x8x1xbf16> to vector<8x1xbf16>
    %95 = arith.extf %94 : vector<8x1xbf16> to vector<8x1xf32>
    %c10_56 = arith.constant 10 : index
    %c0_57 = arith.constant 0 : index
    %c0_58 = arith.constant 0 : index
    %96 = vector.load %arg3[%c10_56, %c0_57, %c0_58] : memref<32x8x128xbf16, #tpu.memory_space<vmem>>, vector<1x8x128xbf16>
    %97 = vector.shape_cast %96 : vector<1x8x128xbf16> to vector<8x128xbf16>
    %98 = arith.extf %97 : vector<8x128xbf16> to vector<8x128xf32>
    %99 = vector.broadcast %95 : vector<8x1xf32> to vector<8x128xf32>
    %100 = arith.mulf %99, %98 : vector<8x128xf32>
    %101 = arith.addf %92, %100 : vector<8x128xf32>
    %c11 = arith.constant 11 : index
    %c0_59 = arith.constant 0 : index
    %c0_60 = arith.constant 0 : index
    %102 = vector.load %arg2[%c11, %c0_59, %c0_60] : memref<32x8x1xbf16, #tpu.memory_space<vmem>>, vector<1x8x1xbf16>
    %103 = vector.shape_cast %102 : vector<1x8x1xbf16> to vector<8x1xbf16>
    %104 = arith.extf %103 : vector<8x1xbf16> to vector<8x1xf32>
    %c11_61 = arith.constant 11 : index
    %c0_62 = arith.constant 0 : index
    %c0_63 = arith.constant 0 : index
    %105 = vector.load %arg3[%c11_61, %c0_62, %c0_63] : memref<32x8x128xbf16, #tpu.memory_space<vmem>>, vector<1x8x128xbf16>
    %106 = vector.shape_cast %105 : vector<1x8x128xbf16> to vector<8x128xbf16>
    %107 = arith.extf %106 : vector<8x128xbf16> to vector<8x128xf32>
    %108 = vector.broadcast %104 : vector<8x1xf32> to vector<8x128xf32>
    %109 = arith.mulf %108, %107 : vector<8x128xf32>
    %110 = arith.addf %101, %109 : vector<8x128xf32>
    %c12 = arith.constant 12 : index
    %c0_64 = arith.constant 0 : index
    %c0_65 = arith.constant 0 : index
    %111 = vector.load %arg2[%c12, %c0_64, %c0_65] : memref<32x8x1xbf16, #tpu.memory_space<vmem>>, vector<1x8x1xbf16>
    %112 = vector.shape_cast %111 : vector<1x8x1xbf16> to vector<8x1xbf16>
    %113 = arith.extf %112 : vector<8x1xbf16> to vector<8x1xf32>
    %c12_66 = arith.constant 12 : index
    %c0_67 = arith.constant 0 : index
    %c0_68 = arith.constant 0 : index
    %114 = vector.load %arg3[%c12_66, %c0_67, %c0_68] : memref<32x8x128xbf16, #tpu.memory_space<vmem>>, vector<1x8x128xbf16>
    %115 = vector.shape_cast %114 : vector<1x8x128xbf16> to vector<8x128xbf16>
    %116 = arith.extf %115 : vector<8x128xbf16> to vector<8x128xf32>
    %117 = vector.broadcast %113 : vector<8x1xf32> to vector<8x128xf32>
    %118 = arith.mulf %117, %116 : vector<8x128xf32>
    %119 = arith.addf %110, %118 : vector<8x128xf32>
    %c13 = arith.constant 13 : index
    %c0_69 = arith.constant 0 : index
    %c0_70 = arith.constant 0 : index
    %120 = vector.load %arg2[%c13, %c0_69, %c0_70] : memref<32x8x1xbf16, #tpu.memory_space<vmem>>, vector<1x8x1xbf16>
    %121 = vector.shape_cast %120 : vector<1x8x1xbf16> to vector<8x1xbf16>
    %122 = arith.extf %121 : vector<8x1xbf16> to vector<8x1xf32>
    %c13_71 = arith.constant 13 : index
    %c0_72 = arith.constant 0 : index
    %c0_73 = arith.constant 0 : index
    %123 = vector.load %arg3[%c13_71, %c0_72, %c0_73] : memref<32x8x128xbf16, #tpu.memory_space<vmem>>, vector<1x8x128xbf16>
    %124 = vector.shape_cast %123 : vector<1x8x128xbf16> to vector<8x128xbf16>
    %125 = arith.extf %124 : vector<8x128xbf16> to vector<8x128xf32>
    %126 = vector.broadcast %122 : vector<8x1xf32> to vector<8x128xf32>
    %127 = arith.mulf %126, %125 : vector<8x128xf32>
    %128 = arith.addf %119, %127 : vector<8x128xf32>
    %c14 = arith.constant 14 : index
    %c0_74 = arith.constant 0 : index
    %c0_75 = arith.constant 0 : index
    %129 = vector.load %arg2[%c14, %c0_74, %c0_75] : memref<32x8x1xbf16, #tpu.memory_space<vmem>>, vector<1x8x1xbf16>
    %130 = vector.shape_cast %129 : vector<1x8x1xbf16> to vector<8x1xbf16>
    %131 = arith.extf %130 : vector<8x1xbf16> to vector<8x1xf32>
    %c14_76 = arith.constant 14 : index
    %c0_77 = arith.constant 0 : index
    %c0_78 = arith.constant 0 : index
    %132 = vector.load %arg3[%c14_76, %c0_77, %c0_78] : memref<32x8x128xbf16, #tpu.memory_space<vmem>>, vector<1x8x128xbf16>
    %133 = vector.shape_cast %132 : vector<1x8x128xbf16> to vector<8x128xbf16>
    %134 = arith.extf %133 : vector<8x128xbf16> to vector<8x128xf32>
    %135 = vector.broadcast %131 : vector<8x1xf32> to vector<8x128xf32>
    %136 = arith.mulf %135, %134 : vector<8x128xf32>
    %137 = arith.addf %128, %136 : vector<8x128xf32>
    %c15 = arith.constant 15 : index
    %c0_79 = arith.constant 0 : index
    %c0_80 = arith.constant 0 : index
    %138 = vector.load %arg2[%c15, %c0_79, %c0_80] : memref<32x8x1xbf16, #tpu.memory_space<vmem>>, vector<1x8x1xbf16>
    %139 = vector.shape_cast %138 : vector<1x8x1xbf16> to vector<8x1xbf16>
    %140 = arith.extf %139 : vector<8x1xbf16> to vector<8x1xf32>
    %c15_81 = arith.constant 15 : index
    %c0_82 = arith.constant 0 : index
    %c0_83 = arith.constant 0 : index
    %141 = vector.load %arg3[%c15_81, %c0_82, %c0_83] : memref<32x8x128xbf16, #tpu.memory_space<vmem>>, vector<1x8x128xbf16>
    %142 = vector.shape_cast %141 : vector<1x8x128xbf16> to vector<8x128xbf16>
    %143 = arith.extf %142 : vector<8x128xbf16> to vector<8x128xf32>
    %144 = vector.broadcast %140 : vector<8x1xf32> to vector<8x128xf32>
    %145 = arith.mulf %144, %143 : vector<8x128xf32>
    %146 = arith.addf %137, %145 : vector<8x128xf32>
    %c16 = arith.constant 16 : index
    %c0_84 = arith.constant 0 : index
    %c0_85 = arith.constant 0 : index
    %147 = vector.load %arg2[%c16, %c0_84, %c0_85] : memref<32x8x1xbf16, #tpu.memory_space<vmem>>, vector<1x8x1xbf16>
    %148 = vector.shape_cast %147 : vector<1x8x1xbf16> to vector<8x1xbf16>
    %149 = arith.extf %148 : vector<8x1xbf16> to vector<8x1xf32>
    %c16_86 = arith.constant 16 : index
    %c0_87 = arith.constant 0 : index
    %c0_88 = arith.constant 0 : index
    %150 = vector.load %arg3[%c16_86, %c0_87, %c0_88] : memref<32x8x128xbf16, #tpu.memory_space<vmem>>, vector<1x8x128xbf16>
    %151 = vector.shape_cast %150 : vector<1x8x128xbf16> to vector<8x128xbf16>
    %152 = arith.extf %151 : vector<8x128xbf16> to vector<8x128xf32>
    %153 = vector.broadcast %149 : vector<8x1xf32> to vector<8x128xf32>
    %154 = arith.mulf %153, %152 : vector<8x128xf32>
    %155 = arith.addf %146, %154 : vector<8x128xf32>
    %c17 = arith.constant 17 : index
    %c0_89 = arith.constant 0 : index
    %c0_90 = arith.constant 0 : index
    %156 = vector.load %arg2[%c17, %c0_89, %c0_90] : memref<32x8x1xbf16, #tpu.memory_space<vmem>>, vector<1x8x1xbf16>
    %157 = vector.shape_cast %156 : vector<1x8x1xbf16> to vector<8x1xbf16>
    %158 = arith.extf %157 : vector<8x1xbf16> to vector<8x1xf32>
    %c17_91 = arith.constant 17 : index
    %c0_92 = arith.constant 0 : index
    %c0_93 = arith.constant 0 : index
    %159 = vector.load %arg3[%c17_91, %c0_92, %c0_93] : memref<32x8x128xbf16, #tpu.memory_space<vmem>>, vector<1x8x128xbf16>
    %160 = vector.shape_cast %159 : vector<1x8x128xbf16> to vector<8x128xbf16>
    %161 = arith.extf %160 : vector<8x128xbf16> to vector<8x128xf32>
    %162 = vector.broadcast %158 : vector<8x1xf32> to vector<8x128xf32>
    %163 = arith.mulf %162, %161 : vector<8x128xf32>
    %164 = arith.addf %155, %163 : vector<8x128xf32>
    %c18 = arith.constant 18 : index
    %c0_94 = arith.constant 0 : index
    %c0_95 = arith.constant 0 : index
    %165 = vector.load %arg2[%c18, %c0_94, %c0_95] : memref<32x8x1xbf16, #tpu.memory_space<vmem>>, vector<1x8x1xbf16>
    %166 = vector.shape_cast %165 : vector<1x8x1xbf16> to vector<8x1xbf16>
    %167 = arith.extf %166 : vector<8x1xbf16> to vector<8x1xf32>
    %c18_96 = arith.constant 18 : index
    %c0_97 = arith.constant 0 : index
    %c0_98 = arith.constant 0 : index
    %168 = vector.load %arg3[%c18_96, %c0_97, %c0_98] : memref<32x8x128xbf16, #tpu.memory_space<vmem>>, vector<1x8x128xbf16>
    %169 = vector.shape_cast %168 : vector<1x8x128xbf16> to vector<8x128xbf16>
    %170 = arith.extf %169 : vector<8x128xbf16> to vector<8x128xf32>
    %171 = vector.broadcast %167 : vector<8x1xf32> to vector<8x128xf32>
    %172 = arith.mulf %171, %170 : vector<8x128xf32>
    %173 = arith.addf %164, %172 : vector<8x128xf32>
    %c19 = arith.constant 19 : index
    %c0_99 = arith.constant 0 : index
    %c0_100 = arith.constant 0 : index
    %174 = vector.load %arg2[%c19, %c0_99, %c0_100] : memref<32x8x1xbf16, #tpu.memory_space<vmem>>, vector<1x8x1xbf16>
    %175 = vector.shape_cast %174 : vector<1x8x1xbf16> to vector<8x1xbf16>
    %176 = arith.extf %175 : vector<8x1xbf16> to vector<8x1xf32>
    %c19_101 = arith.constant 19 : index
    %c0_102 = arith.constant 0 : index
    %c0_103 = arith.constant 0 : index
    %177 = vector.load %arg3[%c19_101, %c0_102, %c0_103] : memref<32x8x128xbf16, #tpu.memory_space<vmem>>, vector<1x8x128xbf16>
    %178 = vector.shape_cast %177 : vector<1x8x128xbf16> to vector<8x128xbf16>
    %179 = arith.extf %178 : vector<8x128xbf16> to vector<8x128xf32>
    %180 = vector.broadcast %176 : vector<8x1xf32> to vector<8x128xf32>
    %181 = arith.mulf %180, %179 : vector<8x128xf32>
    %182 = arith.addf %173, %181 : vector<8x128xf32>
    %c20 = arith.constant 20 : index
    %c0_104 = arith.constant 0 : index
    %c0_105 = arith.constant 0 : index
    %183 = vector.load %arg2[%c20, %c0_104, %c0_105] : memref<32x8x1xbf16, #tpu.memory_space<vmem>>, vector<1x8x1xbf16>
    %184 = vector.shape_cast %183 : vector<1x8x1xbf16> to vector<8x1xbf16>
    %185 = arith.extf %184 : vector<8x1xbf16> to vector<8x1xf32>
    %c20_106 = arith.constant 20 : index
    %c0_107 = arith.constant 0 : index
    %c0_108 = arith.constant 0 : index
    %186 = vector.load %arg3[%c20_106, %c0_107, %c0_108] : memref<32x8x128xbf16, #tpu.memory_space<vmem>>, vector<1x8x128xbf16>
    %187 = vector.shape_cast %186 : vector<1x8x128xbf16> to vector<8x128xbf16>
    %188 = arith.extf %187 : vector<8x128xbf16> to vector<8x128xf32>
    %189 = vector.broadcast %185 : vector<8x1xf32> to vector<8x128xf32>
    %190 = arith.mulf %189, %188 : vector<8x128xf32>
    %191 = arith.addf %182, %190 : vector<8x128xf32>
    %c21 = arith.constant 21 : index
    %c0_109 = arith.constant 0 : index
    %c0_110 = arith.constant 0 : index
    %192 = vector.load %arg2[%c21, %c0_109, %c0_110] : memref<32x8x1xbf16, #tpu.memory_space<vmem>>, vector<1x8x1xbf16>
    %193 = vector.shape_cast %192 : vector<1x8x1xbf16> to vector<8x1xbf16>
    %194 = arith.extf %193 : vector<8x1xbf16> to vector<8x1xf32>
    %c21_111 = arith.constant 21 : index
    %c0_112 = arith.constant 0 : index
    %c0_113 = arith.constant 0 : index
    %195 = vector.load %arg3[%c21_111, %c0_112, %c0_113] : memref<32x8x128xbf16, #tpu.memory_space<vmem>>, vector<1x8x128xbf16>
    %196 = vector.shape_cast %195 : vector<1x8x128xbf16> to vector<8x128xbf16>
    %197 = arith.extf %196 : vector<8x128xbf16> to vector<8x128xf32>
    %198 = vector.broadcast %194 : vector<8x1xf32> to vector<8x128xf32>
    %199 = arith.mulf %198, %197 : vector<8x128xf32>
    %200 = arith.addf %191, %199 : vector<8x128xf32>
    %c22 = arith.constant 22 : index
    %c0_114 = arith.constant 0 : index
    %c0_115 = arith.constant 0 : index
    %201 = vector.load %arg2[%c22, %c0_114, %c0_115] : memref<32x8x1xbf16, #tpu.memory_space<vmem>>, vector<1x8x1xbf16>
    %202 = vector.shape_cast %201 : vector<1x8x1xbf16> to vector<8x1xbf16>
    %203 = arith.extf %202 : vector<8x1xbf16> to vector<8x1xf32>
    %c22_116 = arith.constant 22 : index
    %c0_117 = arith.constant 0 : index
    %c0_118 = arith.constant 0 : index
    %204 = vector.load %arg3[%c22_116, %c0_117, %c0_118] : memref<32x8x128xbf16, #tpu.memory_space<vmem>>, vector<1x8x128xbf16>
    %205 = vector.shape_cast %204 : vector<1x8x128xbf16> to vector<8x128xbf16>
    %206 = arith.extf %205 : vector<8x128xbf16> to vector<8x128xf32>
    %207 = vector.broadcast %203 : vector<8x1xf32> to vector<8x128xf32>
    %208 = arith.mulf %207, %206 : vector<8x128xf32>
    %209 = arith.addf %200, %208 : vector<8x128xf32>
    %c23 = arith.constant 23 : index
    %c0_119 = arith.constant 0 : index
    %c0_120 = arith.constant 0 : index
    %210 = vector.load %arg2[%c23, %c0_119, %c0_120] : memref<32x8x1xbf16, #tpu.memory_space<vmem>>, vector<1x8x1xbf16>
    %211 = vector.shape_cast %210 : vector<1x8x1xbf16> to vector<8x1xbf16>
    %212 = arith.extf %211 : vector<8x1xbf16> to vector<8x1xf32>
    %c23_121 = arith.constant 23 : index
    %c0_122 = arith.constant 0 : index
    %c0_123 = arith.constant 0 : index
    %213 = vector.load %arg3[%c23_121, %c0_122, %c0_123] : memref<32x8x128xbf16, #tpu.memory_space<vmem>>, vector<1x8x128xbf16>
    %214 = vector.shape_cast %213 : vector<1x8x128xbf16> to vector<8x128xbf16>
    %215 = arith.extf %214 : vector<8x128xbf16> to vector<8x128xf32>
    %216 = vector.broadcast %212 : vector<8x1xf32> to vector<8x128xf32>
    %217 = arith.mulf %216, %215 : vector<8x128xf32>
    %218 = arith.addf %209, %217 : vector<8x128xf32>
    %c24 = arith.constant 24 : index
    %c0_124 = arith.constant 0 : index
    %c0_125 = arith.constant 0 : index
    %219 = vector.load %arg2[%c24, %c0_124, %c0_125] : memref<32x8x1xbf16, #tpu.memory_space<vmem>>, vector<1x8x1xbf16>
    %220 = vector.shape_cast %219 : vector<1x8x1xbf16> to vector<8x1xbf16>
    %221 = arith.extf %220 : vector<8x1xbf16> to vector<8x1xf32>
    %c24_126 = arith.constant 24 : index
    %c0_127 = arith.constant 0 : index
    %c0_128 = arith.constant 0 : index
    %222 = vector.load %arg3[%c24_126, %c0_127, %c0_128] : memref<32x8x128xbf16, #tpu.memory_space<vmem>>, vector<1x8x128xbf16>
    %223 = vector.shape_cast %222 : vector<1x8x128xbf16> to vector<8x128xbf16>
    %224 = arith.extf %223 : vector<8x128xbf16> to vector<8x128xf32>
    %225 = vector.broadcast %221 : vector<8x1xf32> to vector<8x128xf32>
    %226 = arith.mulf %225, %224 : vector<8x128xf32>
    %227 = arith.addf %218, %226 : vector<8x128xf32>
    %c25 = arith.constant 25 : index
    %c0_129 = arith.constant 0 : index
    %c0_130 = arith.constant 0 : index
    %228 = vector.load %arg2[%c25, %c0_129, %c0_130] : memref<32x8x1xbf16, #tpu.memory_space<vmem>>, vector<1x8x1xbf16>
    %229 = vector.shape_cast %228 : vector<1x8x1xbf16> to vector<8x1xbf16>
    %230 = arith.extf %229 : vector<8x1xbf16> to vector<8x1xf32>
    %c25_131 = arith.constant 25 : index
    %c0_132 = arith.constant 0 : index
    %c0_133 = arith.constant 0 : index
    %231 = vector.load %arg3[%c25_131, %c0_132, %c0_133] : memref<32x8x128xbf16, #tpu.memory_space<vmem>>, vector<1x8x128xbf16>
    %232 = vector.shape_cast %231 : vector<1x8x128xbf16> to vector<8x128xbf16>
    %233 = arith.extf %232 : vector<8x128xbf16> to vector<8x128xf32>
    %234 = vector.broadcast %230 : vector<8x1xf32> to vector<8x128xf32>
    %235 = arith.mulf %234, %233 : vector<8x128xf32>
    %236 = arith.addf %227, %235 : vector<8x128xf32>
    %c26 = arith.constant 26 : index
    %c0_134 = arith.constant 0 : index
    %c0_135 = arith.constant 0 : index
    %237 = vector.load %arg2[%c26, %c0_134, %c0_135] : memref<32x8x1xbf16, #tpu.memory_space<vmem>>, vector<1x8x1xbf16>
    %238 = vector.shape_cast %237 : vector<1x8x1xbf16> to vector<8x1xbf16>
    %239 = arith.extf %238 : vector<8x1xbf16> to vector<8x1xf32>
    %c26_136 = arith.constant 26 : index
    %c0_137 = arith.constant 0 : index
    %c0_138 = arith.constant 0 : index
    %240 = vector.load %arg3[%c26_136, %c0_137, %c0_138] : memref<32x8x128xbf16, #tpu.memory_space<vmem>>, vector<1x8x128xbf16>
    %241 = vector.shape_cast %240 : vector<1x8x128xbf16> to vector<8x128xbf16>
    %242 = arith.extf %241 : vector<8x128xbf16> to vector<8x128xf32>
    %243 = vector.broadcast %239 : vector<8x1xf32> to vector<8x128xf32>
    %244 = arith.mulf %243, %242 : vector<8x128xf32>
    %245 = arith.addf %236, %244 : vector<8x128xf32>
    %c27 = arith.constant 27 : index
    %c0_139 = arith.constant 0 : index
    %c0_140 = arith.constant 0 : index
    %246 = vector.load %arg2[%c27, %c0_139, %c0_140] : memref<32x8x1xbf16, #tpu.memory_space<vmem>>, vector<1x8x1xbf16>
    %247 = vector.shape_cast %246 : vector<1x8x1xbf16> to vector<8x1xbf16>
    %248 = arith.extf %247 : vector<8x1xbf16> to vector<8x1xf32>
    %c27_141 = arith.constant 27 : index
    %c0_142 = arith.constant 0 : index
    %c0_143 = arith.constant 0 : index
    %249 = vector.load %arg3[%c27_141, %c0_142, %c0_143] : memref<32x8x128xbf16, #tpu.memory_space<vmem>>, vector<1x8x128xbf16>
    %250 = vector.shape_cast %249 : vector<1x8x128xbf16> to vector<8x128xbf16>
    %251 = arith.extf %250 : vector<8x128xbf16> to vector<8x128xf32>
    %252 = vector.broadcast %248 : vector<8x1xf32> to vector<8x128xf32>
    %253 = arith.mulf %252, %251 : vector<8x128xf32>
    %254 = arith.addf %245, %253 : vector<8x128xf32>
    %c28 = arith.constant 28 : index
    %c0_144 = arith.constant 0 : index
    %c0_145 = arith.constant 0 : index
    %255 = vector.load %arg2[%c28, %c0_144, %c0_145] : memref<32x8x1xbf16, #tpu.memory_space<vmem>>, vector<1x8x1xbf16>
    %256 = vector.shape_cast %255 : vector<1x8x1xbf16> to vector<8x1xbf16>
    %257 = arith.extf %256 : vector<8x1xbf16> to vector<8x1xf32>
    %c28_146 = arith.constant 28 : index
    %c0_147 = arith.constant 0 : index
    %c0_148 = arith.constant 0 : index
    %258 = vector.load %arg3[%c28_146, %c0_147, %c0_148] : memref<32x8x128xbf16, #tpu.memory_space<vmem>>, vector<1x8x128xbf16>
    %259 = vector.shape_cast %258 : vector<1x8x128xbf16> to vector<8x128xbf16>
    %260 = arith.extf %259 : vector<8x128xbf16> to vector<8x128xf32>
    %261 = vector.broadcast %257 : vector<8x1xf32> to vector<8x128xf32>
    %262 = arith.mulf %261, %260 : vector<8x128xf32>
    %263 = arith.addf %254, %262 : vector<8x128xf32>
    %c29 = arith.constant 29 : index
    %c0_149 = arith.constant 0 : index
    %c0_150 = arith.constant 0 : index
    %264 = vector.load %arg2[%c29, %c0_149, %c0_150] : memref<32x8x1xbf16, #tpu.memory_space<vmem>>, vector<1x8x1xbf16>
    %265 = vector.shape_cast %264 : vector<1x8x1xbf16> to vector<8x1xbf16>
    %266 = arith.extf %265 : vector<8x1xbf16> to vector<8x1xf32>
    %c29_151 = arith.constant 29 : index
    %c0_152 = arith.constant 0 : index
    %c0_153 = arith.constant 0 : index
    %267 = vector.load %arg3[%c29_151, %c0_152, %c0_153] : memref<32x8x128xbf16, #tpu.memory_space<vmem>>, vector<1x8x128xbf16>
    %268 = vector.shape_cast %267 : vector<1x8x128xbf16> to vector<8x128xbf16>
    %269 = arith.extf %268 : vector<8x128xbf16> to vector<8x128xf32>
    %270 = vector.broadcast %266 : vector<8x1xf32> to vector<8x128xf32>
    %271 = arith.mulf %270, %269 : vector<8x128xf32>
    %272 = arith.addf %263, %271 : vector<8x128xf32>
    %c30 = arith.constant 30 : index
    %c0_154 = arith.constant 0 : index
    %c0_155 = arith.constant 0 : index
    %273 = vector.load %arg2[%c30, %c0_154, %c0_155] : memref<32x8x1xbf16, #tpu.memory_space<vmem>>, vector<1x8x1xbf16>
    %274 = vector.shape_cast %273 : vector<1x8x1xbf16> to vector<8x1xbf16>
    %275 = arith.extf %274 : vector<8x1xbf16> to vector<8x1xf32>
    %c30_156 = arith.constant 30 : index
    %c0_157 = arith.constant 0 : index
    %c0_158 = arith.constant 0 : index
    %276 = vector.load %arg3[%c30_156, %c0_157, %c0_158] : memref<32x8x128xbf16, #tpu.memory_space<vmem>>, vector<1x8x128xbf16>
    %277 = vector.shape_cast %276 : vector<1x8x128xbf16> to vector<8x128xbf16>
    %278 = arith.extf %277 : vector<8x128xbf16> to vector<8x128xf32>
    %279 = vector.broadcast %275 : vector<8x1xf32> to vector<8x128xf32>
    %280 = arith.mulf %279, %278 : vector<8x128xf32>
    %281 = arith.addf %272, %280 : vector<8x128xf32>
    %c31 = arith.constant 31 : index
    %c0_159 = arith.constant 0 : index
    %c0_160 = arith.constant 0 : index
    %282 = vector.load %arg2[%c31, %c0_159, %c0_160] : memref<32x8x1xbf16, #tpu.memory_space<vmem>>, vector<1x8x1xbf16>
    %283 = vector.shape_cast %282 : vector<1x8x1xbf16> to vector<8x1xbf16>
    %284 = arith.extf %283 : vector<8x1xbf16> to vector<8x1xf32>
    %c31_161 = arith.constant 31 : index
    %c0_162 = arith.constant 0 : index
    %c0_163 = arith.constant 0 : index
    %285 = vector.load %arg3[%c31_161, %c0_162, %c0_163] : memref<32x8x128xbf16, #tpu.memory_space<vmem>>, vector<1x8x128xbf16>
    %286 = vector.shape_cast %285 : vector<1x8x128xbf16> to vector<8x128xbf16>
    %287 = arith.extf %286 : vector<8x128xbf16> to vector<8x128xf32>
    %288 = vector.broadcast %284 : vector<8x1xf32> to vector<8x128xf32>
    %289 = arith.mulf %288, %287 : vector<8x128xf32>
    %290 = arith.addf %281, %289 : vector<8x128xf32>
    %c0_164 = arith.constant 0 : index
    %c0_165 = arith.constant 0 : index
    %291 = vector.load %arg6[%c0_164, %c0_165] : memref<8x128xf32, #tpu.memory_space<vmem>>, vector<8x128xf32>
    %292 = arith.mulf %290, %291 : vector<8x128xf32>
    %c0_166 = arith.constant 0 : index
    %c0_167 = arith.constant 0 : index
    %293 = vector.load %arg7[%c0_166, %c0_167] : memref<8x128xf32, #tpu.memory_space<vmem>>, vector<8x128xf32>
    tpu.vector_store %arg7[%c0_166, %c0_167], %292 {strides = array<i32>} : memref<8x128xf32, #tpu.memory_space<vmem>>, vector<8x128xf32>,
    return
  }
  func.func @transform_0(%arg0: i32, %arg1: i32) -> (i32, i32, i32) {
    %c0_i32 = arith.constant 0 : i32
    %c0_i32_0 = arith.constant 0 : i32
    %c0_i32_1 = arith.constant 0 : i32
    return %c0_i32, %arg0, %c0_i32_0 : i32, i32, i32
  }
  func.func @transform_1(%arg0: i32, %arg1: i32) -> (i32, i32, i32) {
    %c0_i32 = arith.constant 0 : i32
    %c0_i32_0 = arith.constant 0 : i32
    return %c0_i32, %arg0, %arg1 : i32, i32, i32
  }
  func.func @transform_2(%arg0: i32, %arg1: i32) -> (i32, i32) {
    %c0_i32 = arith.constant 0 : i32
    return %arg0, %arg1 : i32, i32
  }
  func.func @transform_3(%arg0: i32, %arg1: i32) -> (i32, i32) {
    %c0_i32 = arith.constant 0 : i32
    return %arg0, %arg1 : i32, i32
  }
  func.func @transform_4(%arg0: i32, %arg1: i32) -> (i32, i32) {
    %c0_i32 = arith.constant 0 : i32
    return %arg0, %arg1 : i32, i32
  }
  func.func @transform_5(%arg0: i32, %arg1: i32) -> (i32, i32) {
    %c0_i32 = arith.constant 0 : i32
    return %arg0, %arg1 : i32, i32
  }
}

</mosaic_0001>

<llo_original>
// kernel: pr_network_forward.2
$region0: #{pr_network_forward.2}
  #allocation0 [shape = 'u32[]', space=smem, size = 0x4, offset = 0x4, fixed_abs, tag = 'smem constant byte address 0x4 - core index']
  #allocation1 [shape = 'u32[144,128]{1,0:T(1,128)}', space=vmem, size = 0x12000, scoped, tag = 'internal scratch']
  #allocation2 [shape = 'u32[2048]{0}', space=vmem, size = 0x2000, scoped, tag = 'scoped memory for pr_network_forward.2']
  #allocation3 [shape = 'u32[2048]{0}', space=vmem, size = 0x2000, scoped, tag = 'scoped memory for pr_network_forward.2']
  #allocation4 [shape = 'u32[2048]{0}', space=vmem, size = 0x2000, scoped, tag = 'scoped memory for pr_network_forward.2']
  #allocation5 [shape = 'u32[2048]{0}', space=vmem, size = 0x2000, scoped, tag = 'scoped memory for pr_network_forward.2']
  #allocation6 [shape = 'u32[2048]{0}', space=vmem, size = 0x2000, scoped, tag = 'scoped memory for pr_network_forward.2']
  #allocation7 [shape = 'u32[2048]{0}', space=vmem, size = 0x2000, scoped, tag = 'scoped memory for pr_network_forward.2']
  #allocation8 [shape = 'u32[2048]{0}', space=vmem, size = 0x2000, scoped, tag = 'scoped memory for pr_network_forward.2']
  #allocation9 [shape = 'u32[2048]{0}', space=vmem, size = 0x2000, scoped, tag = 'scoped memory for pr_network_forward.2']
  #allocation10 [shape = 'u32[2048]{0}', space=vmem, size = 0x2000, scoped, tag = 'scoped memory for pr_network_forward.2']
  #allocation11 [shape = 'u32[2048]{0}', space=vmem, size = 0x2000, scoped, tag = 'scoped memory for pr_network_forward.2']
  %s0 = inlined_call_operand.vmem [shape: bf16[32,8,1], index: 0, kind: input, shape index: {}]
  %s1 = inlined_call_operand.vmem [shape: bf16[8,128,32], index: 1, kind: input, shape index: {}]
  %s2 = inlined_call_operand.vmem [shape: f32[1024], index: 2, kind: input, shape index: {}]
  %s3 = inlined_call_operand.vmem [shape: f32[2,8], index: 3, kind: input, shape index: {}]
  %s4 = inlined_call_operand.<no memory space> [shape: f32[], index: 4, kind: input, shape index: {}]
  %s5 = inlined_call_operand.vmem [shape: f32[2,8], index: 5, kind: input, shape index: {}]
  %s6 = inlined_call_operand.vmem [shape: f32[8,128], index: 6, kind: output, shape index: {}]
  %s7 = sld [smem:[#allocation0]]
  $region30: #{pr_network_forward.2} parent=0
    _
  %s9 = ssub.s32 1, %s7
  %s10 = scalar_select 0, %s9, %s7
  %v11 = vstv %s4
  %v12 = vstv %s4
  $region1: #{pr_network_forward.2} parent=0
    #allocation12 [shape = 'u8[65536]{0}', space=vmem, size = 0x10000, dematerialized = true, scoped, tag = 'FusionAdapter Buffer %fusion.1 = bf16[32,8,128]{2,1,0:T(8,128)(2,1)} fusion(%param_1.29), kind=kLoop, calls=%fused_computation.4.clone, metadata={op_name="jit(pr_network_forward)/gather" stack_frame_id=15}']
    #allocation13 [shape = 'u8[4096]{0}', space=vmem, size = 0x1000, dematerialized = true, scoped, tag = 'FusionAdapter Buffer %fusion.2 = f32[8,128]{1,0:T(8,128)} fusion(%param_2.19), kind=kLoop, calls=%fused_computation.7.clone, metadata={op_name="jit(pr_network_forward)/gather" stack_frame_id=7}']
    #allocation14 [shape = 'u8[4096]{0}', space=vmem, size = 0x1000, dematerialized = true, scoped, tag = 'FusionAdapter Buffer %fusion.4 = f32[8,128]{1,0:T(8,128)} fusion(%param_5.1, %param_4.4), kind=kLoop, calls=%fused_computation.11.clone, metadata={op_name="jit(pr_network_forward)/jit(_pad)/pad" stack_frame_id=10}']
    #allocation15 [shape = 'u8[4096]{0}', space=vmem, size = 0x1000, dematerialized = true, scoped, tag = 'FusionAdapter Buffer %fusion.3 = f32[8,128]{1,0:T(8,128)} fusion(%param_3.11, %param_4.4), kind=kLoop, calls=%fused_computation.10.clone, metadata={op_name="jit(pr_network_forward)/jit(_pad)/pad" stack_frame_id=12}']
    // Predicated region
    $region2: #{pr_network_forward.2} parent=1 // pred_check
      _
    $region3: #{pr_network_forward.2} parent=1 // pred_check_branch
      %14 = sbr.rel (0) target = $region5
    $region4: #{pr_network_forward.2} parent=1 // pred_region
      _
    $region5: #{pr_network_forward.2} parent=1 // pred_fallthru
      _
    // Predicated region
    $region6: #{pr_network_forward.2} parent=1 // pred_check
      _
    $region7: #{pr_network_forward.2} parent=1 // pred_check_branch
      %16 = sbr.rel (0) target = $region9
    $region8: #{pr_network_forward.2} parent=1 // pred_region
      _
    $region9: #{pr_network_forward.2} parent=1 // pred_fallthru
      _
    // Predicated region
    $region10: #{pr_network_forward.2} parent=1 // pred_check
      _
    $region11: #{pr_network_forward.2} parent=1 // pred_check_branch
      %18 = sbr.rel (0) target = $region13
    $region12: #{pr_network_forward.2} parent=1 // pred_region
      _
    $region13: #{pr_network_forward.2} parent=1 // pred_fallthru
      _
    // Predicated region
    $region14: #{pr_network_forward.2} parent=1 // pred_check
      _
    $region15: #{pr_network_forward.2} parent=1 // pred_check_branch
      %20 = sbr.rel (0) target = $region17
    $region16: #{pr_network_forward.2} parent=1 // pred_region
      _
    $region17: #{pr_network_forward.2} parent=1 // pred_fallthru
      _
    // Predicated region
    $region18: #{pr_network_forward.2} parent=1 // pred_check
      _
    $region19: #{pr_network_forward.2} parent=1 // pred_check_branch
      %22 = sbr.rel (0) target = $region21
    $region20: #{pr_network_forward.2} parent=1 // pred_region
      _
    $region21: #{pr_network_forward.2} parent=1 // pred_fallthru
      _
    %v23 = vld [vmem:[%s1] sm:$0xf]
    %v24 = vunpack.c.l.bf16 %v23
    %v25 = vunpack.c.h.bf16 %v23
    %v26 = vpack.c.bf16 0.0, %v24
    %s28 = ssub.s32 16, 1
    %29 = vst [vmem:[#allocation12] sm:%s28] %v26
    %s30 = scalar_lea.vmem %s1, 4
    %v31 = vld [vmem:[%s30] sm:$0xf]
    %v32 = vunpack.c.l.bf16 %v31
    %v33 = vunpack.c.h.bf16 %v31
    %s34 = scalar_lea.vmem [#allocation12], 4
    %v35 = vpack.c.bf16 0.0, %v32
    %s37 = ssub.s32 16, 1
    %38 = vst [vmem:[%s34] sm:%s37] %v35
    %s39 = scalar_lea.vmem %s1, 8
    %v40 = vld [vmem:[%s39] sm:$0xf]
    %v41 = vunpack.c.l.bf16 %v40
    %v42 = vunpack.c.h.bf16 %v40
    %s43 = scalar_lea.vmem [#allocation12], 8
    %v44 = vpack.c.bf16 0.0, %v41
    %s46 = ssub.s32 16, 1
    %47 = vst [vmem:[%s43] sm:%s46] %v44
    %s48 = scalar_lea.vmem %s1, 12
    %v49 = vld [vmem:[%s48] sm:$0xf]
    %v50 = vunpack.c.l.bf16 %v49
    %v51 = vunpack.c.h.bf16 %v49
    %s52 = scalar_lea.vmem [#allocation12], 12
    %v53 = vpack.c.bf16 0.0, %v50
    %s55 = ssub.s32 16, 1
    %56 = vst [vmem:[%s52] sm:%s55] %v53
    %s57 = scalar_lea.vmem %s1, 16
    %v58 = vld [vmem:[%s57] sm:$0xf]
    %v59 = vunpack.c.l.bf16 %v58
    %v60 = vunpack.c.h.bf16 %v58
    %s61 = scalar_lea.vmem [#allocation12], 16
    %v62 = vpack.c.bf16 0.0, %v59
    %s64 = ssub.s32 16, 1
    %65 = vst [vmem:[%s61] sm:%s64] %v62
    %s66 = scalar_lea.vmem %s1, 20
    %v67 = vld [vmem:[%s66] sm:$0xf]
    %v68 = vunpack.c.l.bf16 %v67
    %v69 = vunpack.c.h.bf16 %v67
    %s70 = scalar_lea.vmem [#allocation12], 20
    %v71 = vpack.c.bf16 0.0, %v68
    %s73 = ssub.s32 16, 1
    %74 = vst [vmem:[%s70] sm:%s73] %v71
    %s75 = scalar_lea.vmem %s1, 24
    %v76 = vld [vmem:[%s75] sm:$0xf]
    %v77 = vunpack.c.l.bf16 %v76
    %v78 = vunpack.c.h.bf16 %v76
    %s79 = scalar_lea.vmem [#allocation12], 24
    %v80 = vpack.c.bf16 0.0, %v77
    %s82 = ssub.s32 16, 1
    %83 = vst [vmem:[%s79] sm:%s82] %v80
    %s84 = scalar_lea.vmem %s1, 28
    %v85 = vld [vmem:[%s84] sm:$0xf]
    %v86 = vunpack.c.l.bf16 %v85
    %v87 = vunpack.c.h.bf16 %v85
    %s88 = scalar_lea.vmem [#allocation12], 28
    %v89 = vpack.c.bf16 0.0, %v86
    %s91 = ssub.s32 16, 1
    %92 = vst [vmem:[%s88] sm:%s91] %v89
    %s93 = scalar_lea.vmem %s1, 32
    %v94 = vld [vmem:[%s93] sm:$0xf]
    %v95 = vunpack.c.l.bf16 %v94
    %v96 = vunpack.c.h.bf16 %v94
    %s97 = scalar_lea.vmem [#allocation12], 32
    %v98 = vpack.c.bf16 0.0, %v95
    %s100 = ssub.s32 16, 1
    %101 = vst [vmem:[%s97] sm:%s100] %v98
    %s102 = scalar_lea.vmem %s1, 36
    %v103 = vld [vmem:[%s102] sm:$0xf]
    %v104 = vunpack.c.l.bf16 %v103
    %v105 = vunpack.c.h.bf16 %v103
    %s106 = scalar_lea.vmem [#allocation12], 36
    %v107 = vpack.c.bf16 0.0, %v104
    %s109 = ssub.s32 16, 1
    %110 = vst [vmem:[%s106] sm:%s109] %v107
    %s111 = scalar_lea.vmem %s1, 40
    %v112 = vld [vmem:[%s111] sm:$0xf]
    %v113 = vunpack.c.l.bf16 %v112
    %v114 = vunpack.c.h.bf16 %v112
    %s115 = scalar_lea.vmem [#allocation12], 40
    %v116 = vpack.c.bf16 0.0, %v113
    %s118 = ssub.s32 16, 1
    %119 = vst [vmem:[%s115] sm:%s118] %v116
    %s120 = scalar_lea.vmem %s1, 44
    %v121 = vld [vmem:[%s120] sm:$0xf]
    %v122 = vunpack.c.l.bf16 %v121
    %v123 = vunpack.c.h.bf16 %v121
    %s124 = scalar_lea.vmem [#allocation12], 44
    %v125 = vpack.c.bf16 0.0, %v122
    %s127 = ssub.s32 16, 1
    %128 = vst [vmem:[%s124] sm:%s127] %v125
    %s129 = scalar_lea.vmem %s1, 48
    %v130 = vld [vmem:[%s129] sm:$0xf]
    %v131 = vunpack.c.l.bf16 %v130
    %v132 = vunpack.c.h.bf16 %v130
    %s133 = scalar_lea.vmem [#allocation12], 48
    %v134 = vpack.c.bf16 0.0, %v131
    %s136 = ssub.s32 16, 1
    %137 = vst [vmem:[%s133] sm:%s136] %v134
    %s138 = scalar_lea.vmem %s1, 52
    %v139 = vld [vmem:[%s138] sm:$0xf]
    %v140 = vunpack.c.l.bf16 %v139
    %v141 = vunpack.c.h.bf16 %v139
    %s142 = scalar_lea.vmem [#allocation12], 52
    %v143 = vpack.c.bf16 0.0, %v140
    %s145 = ssub.s32 16, 1
    %146 = vst [vmem:[%s142] sm:%s145] %v143
    %s147 = scalar_lea.vmem %s1, 56
    %v148 = vld [vmem:[%s147] sm:$0xf]
    %v149 = vunpack.c.l.bf16 %v148
    %v150 = vunpack.c.h.bf16 %v148
    %s151 = scalar_lea.vmem [#allocation12], 56
    %v152 = vpack.c.bf16 0.0, %v149
    %s154 = ssub.s32 16, 1
    %155 = vst [vmem:[%s151] sm:%s154] %v152
    %s156 = scalar_lea.vmem %s1, 60
    %v157 = vld [vmem:[%s156] sm:$0xf]
    %v158 = vunpack.c.l.bf16 %v157
    %v159 = vunpack.c.h.bf16 %v157
    %s160 = scalar_lea.vmem [#allocation12], 60
    %v161 = vpack.c.bf16 0.0, %v158
    %s163 = ssub.s32 16, 1
    %164 = vst [vmem:[%s160] sm:%s163] %v161
    %s165 = scalar_lea.vmem %s1, 64
    %v166 = vld [vmem:[%s165] sm:$0xf]
    %v167 = vunpack.c.l.bf16 %v166
    %v168 = vunpack.c.h.bf16 %v166
    %s169 = scalar_lea.vmem [#allocation12], 64
    %v170 = vpack.c.bf16 0.0, %v167
    %s172 = ssub.s32 16, 1
    %173 = vst [vmem:[%s169] sm:%s172] %v170
    %s174 = scalar_lea.vmem %s1, 68
    %v175 = vld [vmem:[%s174] sm:$0xf]
    %v176 = vunpack.c.l.bf16 %v175
    %v177 = vunpack.c.h.bf16 %v175
    %s178 = scalar_lea.vmem [#allocation12], 68
    %v179 = vpack.c.bf16 0.0, %v176
    %s181 = ssub.s32 16, 1
    %182 = vst [vmem:[%s178] sm:%s181] %v179
    %s183 = scalar_lea.vmem %s1, 72
    %v184 = vld [vmem:[%s183] sm:$0xf]
    %v185 = vunpack.c.l.bf16 %v184
    %v186 = vunpack.c.h.bf16 %v184
    %s187 = scalar_lea.vmem [#allocation12], 72
    %v188 = vpack.c.bf16 0.0, %v185
    %s190 = ssub.s32 16, 1
    %191 = vst [vmem:[%s187] sm:%s190] %v188
    %s192 = scalar_lea.vmem %s1, 76
    %v193 = vld [vmem:[%s192] sm:$0xf]
    %v194 = vunpack.c.l.bf16 %v193
    %v195 = vunpack.c.h.bf16 %v193
    %s196 = scalar_lea.vmem [#allocation12], 76
    %v197 = vpack.c.bf16 0.0, %v194
    %s199 = ssub.s32 16, 1
    %200 = vst [vmem:[%s196] sm:%s199] %v197
    %s201 = scalar_lea.vmem %s1, 80
    %v202 = vld [vmem:[%s201] sm:$0xf]
    %v203 = vunpack.c.l.bf16 %v202
    %v204 = vunpack.c.h.bf16 %v202
    %s205 = scalar_lea.vmem [#allocation12], 80
    %v206 = vpack.c.bf16 0.0, %v203
    %s208 = ssub.s32 16, 1
    %209 = vst [vmem:[%s205] sm:%s208] %v206
    %s210 = scalar_lea.vmem %s1, 84
    %v211 = vld [vmem:[%s210] sm:$0xf]
    %v212 = vunpack.c.l.bf16 %v211
    %v213 = vunpack.c.h.bf16 %v211
    %s214 = scalar_lea.vmem [#allocation12], 84
    %v215 = vpack.c.bf16 0.0, %v212
    %s217 = ssub.s32 16, 1
    %218 = vst [vmem:[%s214] sm:%s217] %v215
    %s219 = scalar_lea.vmem %s1, 88
    %v220 = vld [vmem:[%s219] sm:$0xf]
    %v221 = vunpack.c.l.bf16 %v220
    %v222 = vunpack.c.h.bf16 %v220
    %s223 = scalar_lea.vmem [#allocation12], 88
    %v224 = vpack.c.bf16 0.0, %v221
    %s226 = ssub.s32 16, 1
    %227 = vst [vmem:[%s223] sm:%s226] %v224
    %s228 = scalar_lea.vmem %s1, 92
    %v229 = vld [vmem:[%s228] sm:$0xf]
    %v230 = vunpack.c.l.bf16 %v229
    %v231 = vunpack.c.h.bf16 %v229
    %s232 = scalar_lea.vmem [#allocation12], 92
    %v233 = vpack.c.bf16 0.0, %v230
    %s235 = ssub.s32 16, 1
    %236 = vst [vmem:[%s232] sm:%s235] %v233
    %s237 = scalar_lea.vmem %s1, 96
    %v238 = vld [vmem:[%s237] sm:$0xf]
    %v239 = vunpack.c.l.bf16 %v238
    %v240 = vunpack.c.h.bf16 %v238
    %s241 = scalar_lea.vmem [#allocation12], 96
    %v242 = vpack.c.bf16 0.0, %v239
    %s244 = ssub.s32 16, 1
    %245 = vst [vmem:[%s241] sm:%s244] %v242
    %s246 = scalar_lea.vmem %s1, 100
    %v247 = vld [vmem:[%s246] sm:$0xf]
    %v248 = vunpack.c.l.bf16 %v247
    %v249 = vunpack.c.h.bf16 %v247
    %s250 = scalar_lea.vmem [#allocation12], 100
    %v251 = vpack.c.bf16 0.0, %v248
    %s253 = ssub.s32 16, 1
    %254 = vst [vmem:[%s250] sm:%s253] %v251
    %s255 = scalar_lea.vmem %s1, 104
    %v256 = vld [vmem:[%s255] sm:$0xf]
    %v257 = vunpack.c.l.bf16 %v256
    %v258 = vunpack.c.h.bf16 %v256
    %s259 = scalar_lea.vmem [#allocation12], 104
    %v260 = vpack.c.bf16 0.0, %v257
    %s262 = ssub.s32 16, 1
    %263 = vst [vmem:[%s259] sm:%s262] %v260
    %s264 = scalar_lea.vmem %s1, 108
    %v265 = vld [vmem:[%s264] sm:$0xf]
    %v266 = vunpack.c.l.bf16 %v265
    %v267 = vunpack.c.h.bf16 %v265
    %s268 = scalar_lea.vmem [#allocation12], 108
    %v269 = vpack.c.bf16 0.0, %v266
    %s271 = ssub.s32 16, 1
    %272 = vst [vmem:[%s268] sm:%s271] %v269
    %s273 = scalar_lea.vmem %s1, 112
    %v274 = vld [vmem:[%s273] sm:$0xf]
    %v275 = vunpack.c.l.bf16 %v274
    %v276 = vunpack.c.h.bf16 %v274
    %s277 = scalar_lea.vmem [#allocation12], 112
    %v278 = vpack.c.bf16 0.0, %v275
    %s280 = ssub.s32 16, 1
    %281 = vst [vmem:[%s277] sm:%s280] %v278
    %s282 = scalar_lea.vmem %s1, 116
    %v283 = vld [vmem:[%s282] sm:$0xf]
    %v284 = vunpack.c.l.bf16 %v283
    %v285 = vunpack.c.h.bf16 %v283
    %s286 = scalar_lea.vmem [#allocation12], 116
    %v287 = vpack.c.bf16 0.0, %v284
    %s289 = ssub.s32 16, 1
    %290 = vst [vmem:[%s286] sm:%s289] %v287
    %s291 = scalar_lea.vmem %s1, 120
    %v292 = vld [vmem:[%s291] sm:$0xf]
    %v293 = vunpack.c.l.bf16 %v292
    %v294 = vunpack.c.h.bf16 %v292
    %s295 = scalar_lea.vmem [#allocation12], 120
    %v296 = vpack.c.bf16 0.0, %v293
    %s298 = ssub.s32 16, 1
    %299 = vst [vmem:[%s295] sm:%s298] %v296
    %s300 = scalar_lea.vmem %s1, 124
    %v301 = vld [vmem:[%s300] sm:$0xf]
    %v302 = vunpack.c.l.bf16 %v301
    %v303 = vunpack.c.h.bf16 %v301
    %s304 = scalar_lea.vmem [#allocation12], 124
    %v305 = vpack.c.bf16 0.0, %v302
    %s307 = ssub.s32 16, 1
    %308 = vst [vmem:[%s304] sm:%s307] %v305
    %v309 = vld [vmem:[%s2] sm:$0xff]
    %s311 = ssub.s32 256, 1
    %312 = vst [vmem:[#allocation13] sm:%s311] %v309
    %v313 = vld [vmem:[%s5] sm:$0x3]
    %v314 = vlaneseq
    %v315 = vshrl.u32 %v314, 7
    %vm317 = vcmp.lt.s32.totalorder %v315, 2
    %v318 = vsel %vm317, %v313, %v11
    %v319 = vlaneseq
    %v320 = vand.u32 %v319, 127
    %vm322 = vcmp.lt.s32.totalorder %v320, 8
    %v323 = vsel %vm322, %v318, %v11
    %s325 = ssub.s32 256, 1
    %326 = vst [vmem:[#allocation14] sm:%s325] %v323
    %v327 = vld [vmem:[%s3] sm:$0x3]
    %v328 = vlaneseq
    %v329 = vshrl.u32 %v328, 7
    %vm331 = vcmp.lt.s32.totalorder %v329, 2
    %v332 = vsel %vm331, %v327, %v12
    %v333 = vlaneseq
    %v334 = vand.u32 %v333, 127
    %vm336 = vcmp.lt.s32.totalorder %v334, 8
    %v337 = vsel %vm336, %v332, %v12
    %s339 = ssub.s32 256, 1
    %340 = vst [vmem:[#allocation15] sm:%s339] %v337
    %v341 = vld [vmem:[#allocation14] sm:$0xff]
    %v342 = vld [vmem:[#allocation13] sm:$0xff]
    %v343 = vmul.f32 %v341, %v342
    %v344 = vld [vmem:[%s0] sm:$0xf]
    %v345 = vunpack.c.l.bf16 %v344
    %v346 = vld [vmem:[#allocation12] sm:$0xf]
    %v347 = vunpack.c.l.bf16 %v346
    %349 = vset.pattern.permute.xlu0 0
    %350 = vperm.xlu0 %349, %v345
    %v351 = vpop.permute.xlu0 %350
    %v353 = vmul.f32 %v351, %v347
    %v354 = vadd.f32 %v343, %v353
    %s355 = scalar_lea.vmem %s0, 4
    %v356 = vld [vmem:[%s355] sm:$0xf]
    %v357 = vunpack.c.l.bf16 %v356
    %s358 = scalar_lea.vmem [#allocation12], 4
    %v359 = vld [vmem:[%s358] sm:$0xf]
    %v360 = vunpack.c.l.bf16 %v359
    %362 = vset.pattern.permute.xlu0 0
    %363 = vperm.xlu0 %362, %v357
    %v364 = vpop.permute.xlu0 %363
    %v366 = vmul.f32 %v364, %v360
    %v367 = vadd.f32 %v354, %v366
    %s368 = scalar_lea.vmem %s0, 8
    %v369 = vld [vmem:[%s368] sm:$0xf]
    %v370 = vunpack.c.l.bf16 %v369
    %s371 = scalar_lea.vmem [#allocation12], 8
    %v372 = vld [vmem:[%s371] sm:$0xf]
    %v373 = vunpack.c.l.bf16 %v372
    %375 = vset.pattern.permute.xlu0 0
    %376 = vperm.xlu0 %375, %v370
    %v377 = vpop.permute.xlu0 %376
    %v379 = vmul.f32 %v377, %v373
    %v380 = vadd.f32 %v367, %v379
    %s381 = scalar_lea.vmem %s0, 12
    %v382 = vld [vmem:[%s381] sm:$0xf]
    %v383 = vunpack.c.l.bf16 %v382
    %s384 = scalar_lea.vmem [#allocation12], 12
    %v385 = vld [vmem:[%s384] sm:$0xf]
    %v386 = vunpack.c.l.bf16 %v385
    %388 = vset.pattern.permute.xlu0 0
    %389 = vperm.xlu0 %388, %v383
    %v390 = vpop.permute.xlu0 %389
    %v392 = vmul.f32 %v390, %v386
    %v393 = vadd.f32 %v380, %v392
    %s394 = scalar_lea.vmem %s0, 16
    %v395 = vld [vmem:[%s394] sm:$0xf]
    %v396 = vunpack.c.l.bf16 %v395
    %s397 = scalar_lea.vmem [#allocation12], 16
    %v398 = vld [vmem:[%s397] sm:$0xf]
    %v399 = vunpack.c.l.bf16 %v398
    %401 = vset.pattern.permute.xlu0 0
    %402 = vperm.xlu0 %401, %v396
    %v403 = vpop.permute.xlu0 %402
    %v405 = vmul.f32 %v403, %v399
    %v406 = vadd.f32 %v393, %v405
    %s407 = scalar_lea.vmem %s0, 20
    %v408 = vld [vmem:[%s407] sm:$0xf]
    %v409 = vunpack.c.l.bf16 %v408
    %s410 = scalar_lea.vmem [#allocation12], 20
    %v411 = vld [vmem:[%s410] sm:$0xf]
    %v412 = vunpack.c.l.bf16 %v411
    %414 = vset.pattern.permute.xlu0 0
    %415 = vperm.xlu0 %414, %v409
    %v416 = vpop.permute.xlu0 %415
    %v418 = vmul.f32 %v416, %v412
    %v419 = vadd.f32 %v406, %v418
    %s420 = scalar_lea.vmem %s0, 24
    %v421 = vld [vmem:[%s420] sm:$0xf]
    %v422 = vunpack.c.l.bf16 %v421
    %s423 = scalar_lea.vmem [#allocation12], 24
    %v424 = vld [vmem:[%s423] sm:$0xf]
    %v425 = vunpack.c.l.bf16 %v424
    %427 = vset.pattern.permute.xlu0 0
    %428 = vperm.xlu0 %427, %v422
    %v429 = vpop.permute.xlu0 %428
    %v431 = vmul.f32 %v429, %v425
    %v432 = vadd.f32 %v419, %v431
    %s433 = scalar_lea.vmem %s0, 28
    %v434 = vld [vmem:[%s433] sm:$0xf]
    %v435 = vunpack.c.l.bf16 %v434
    %s436 = scalar_lea.vmem [#allocation12], 28
    %v437 = vld [vmem:[%s436] sm:$0xf]
    %v438 = vunpack.c.l.bf16 %v437
    %440 = vset.pattern.permute.xlu0 0
    %441 = vperm.xlu0 %440, %v435
    %v442 = vpop.permute.xlu0 %441
    %v444 = vmul.f32 %v442, %v438
    %v445 = vadd.f32 %v432, %v444
    %s446 = scalar_lea.vmem %s0, 32
    %v447 = vld [vmem:[%s446] sm:$0xf]
    %v448 = vunpack.c.l.bf16 %v447
    %s449 = scalar_lea.vmem [#allocation12], 32
    %v450 = vld [vmem:[%s449] sm:$0xf]
    %v451 = vunpack.c.l.bf16 %v450
    %453 = vset.pattern.permute.xlu0 0
    %454 = vperm.xlu0 %453, %v448
    %v455 = vpop.permute.xlu0 %454
    %v457 = vmul.f32 %v455, %v451
    %v458 = vadd.f32 %v445, %v457
    %s459 = scalar_lea.vmem %s0, 36
    %v460 = vld [vmem:[%s459] sm:$0xf]
    %v461 = vunpack.c.l.bf16 %v460
    %s462 = scalar_lea.vmem [#allocation12], 36
    %v463 = vld [vmem:[%s462] sm:$0xf]
    %v464 = vunpack.c.l.bf16 %v463
    %466 = vset.pattern.permute.xlu0 0
    %467 = vperm.xlu0 %466, %v461
    %v468 = vpop.permute.xlu0 %467
    %v470 = vmul.f32 %v468, %v464
    %v471 = vadd.f32 %v458, %v470
    %s472 = scalar_lea.vmem %s0, 40
    %v473 = vld [vmem:[%s472] sm:$0xf]
    %v474 = vunpack.c.l.bf16 %v473
    %s475 = scalar_lea.vmem [#allocation12], 40
    %v476 = vld [vmem:[%s475] sm:$0xf]
    %v477 = vunpack.c.l.bf16 %v476
    %479 = vset.pattern.permute.xlu0 0
    %480 = vperm.xlu0 %479, %v474
    %v481 = vpop.permute.xlu0 %480
    %v483 = vmul.f32 %v481, %v477
    %v484 = vadd.f32 %v471, %v483
    %s485 = scalar_lea.vmem %s0, 44
    %v486 = vld [vmem:[%s485] sm:$0xf]
    %v487 = vunpack.c.l.bf16 %v486
    %s488 = scalar_lea.vmem [#allocation12], 44
    %v489 = vld [vmem:[%s488] sm:$0xf]
    %v490 = vunpack.c.l.bf16 %v489
    %492 = vset.pattern.permute.xlu0 0
    %493 = vperm.xlu0 %492, %v487
    %v494 = vpop.permute.xlu0 %493
    %v496 = vmul.f32 %v494, %v490
    %v497 = vadd.f32 %v484, %v496
    %s498 = scalar_lea.vmem %s0, 48
    %v499 = vld [vmem:[%s498] sm:$0xf]
    %v500 = vunpack.c.l.bf16 %v499
    %s501 = scalar_lea.vmem [#allocation12], 48
    %v502 = vld [vmem:[%s501] sm:$0xf]
    %v503 = vunpack.c.l.bf16 %v502
    %505 = vset.pattern.permute.xlu0 0
    %506 = vperm.xlu0 %505, %v500
    %v507 = vpop.permute.xlu0 %506
    %v509 = vmul.f32 %v507, %v503
    %v510 = vadd.f32 %v497, %v509
    %s511 = scalar_lea.vmem %s0, 52
    %v512 = vld [vmem:[%s511] sm:$0xf]
    %v513 = vunpack.c.l.bf16 %v512
    %s514 = scalar_lea.vmem [#allocation12], 52
    %v515 = vld [vmem:[%s514] sm:$0xf]
    %v516 = vunpack.c.l.bf16 %v515
    %518 = vset.pattern.permute.xlu0 0
    %519 = vperm.xlu0 %518, %v513
    %v520 = vpop.permute.xlu0 %519
    %v522 = vmul.f32 %v520, %v516
    %v523 = vadd.f32 %v510, %v522
    %s524 = scalar_lea.vmem %s0, 56
    %v525 = vld [vmem:[%s524] sm:$0xf]
    %v526 = vunpack.c.l.bf16 %v525
    %s527 = scalar_lea.vmem [#allocation12], 56
    %v528 = vld [vmem:[%s527] sm:$0xf]
    %v529 = vunpack.c.l.bf16 %v528
    %531 = vset.pattern.permute.xlu0 0
    %532 = vperm.xlu0 %531, %v526
    %v533 = vpop.permute.xlu0 %532
    %v535 = vmul.f32 %v533, %v529
    %v536 = vadd.f32 %v523, %v535
    %s537 = scalar_lea.vmem %s0, 60
    %v538 = vld [vmem:[%s537] sm:$0xf]
    %v539 = vunpack.c.l.bf16 %v538
    %s540 = scalar_lea.vmem [#allocation12], 60
    %v541 = vld [vmem:[%s540] sm:$0xf]
    %v542 = vunpack.c.l.bf16 %v541
    %544 = vset.pattern.permute.xlu0 0
    %545 = vperm.xlu0 %544, %v539
    %v546 = vpop.permute.xlu0 %545
    %v548 = vmul.f32 %v546, %v542
    %v549 = vadd.f32 %v536, %v548
    %s550 = scalar_lea.vmem %s0, 64
    %v551 = vld [vmem:[%s550] sm:$0xf]
    %v552 = vunpack.c.l.bf16 %v551
    %s553 = scalar_lea.vmem [#allocation12], 64
    %v554 = vld [vmem:[%s553] sm:$0xf]
    %v555 = vunpack.c.l.bf16 %v554
    %557 = vset.pattern.permute.xlu0 0
    %558 = vperm.xlu0 %557, %v552
    %v559 = vpop.permute.xlu0 %558
    %v561 = vmul.f32 %v559, %v555
    %v562 = vadd.f32 %v549, %v561
    %s563 = scalar_lea.vmem %s0, 68
    %v564 = vld [vmem:[%s563] sm:$0xf]
    %v565 = vunpack.c.l.bf16 %v564
    %s566 = scalar_lea.vmem [#allocation12], 68
    %v567 = vld [vmem:[%s566] sm:$0xf]
    %v568 = vunpack.c.l.bf16 %v567
    %570 = vset.pattern.permute.xlu0 0
    %571 = vperm.xlu0 %570, %v565
    %v572 = vpop.permute.xlu0 %571
    %v574 = vmul.f32 %v572, %v568
    %v575 = vadd.f32 %v562, %v574
    %s576 = scalar_lea.vmem %s0, 72
    %v577 = vld [vmem:[%s576] sm:$0xf]
    %v578 = vunpack.c.l.bf16 %v577
    %s579 = scalar_lea.vmem [#allocation12], 72
    %v580 = vld [vmem:[%s579] sm:$0xf]
    %v581 = vunpack.c.l.bf16 %v580
    %583 = vset.pattern.permute.xlu0 0
    %584 = vperm.xlu0 %583, %v578
    %v585 = vpop.permute.xlu0 %584
    %v587 = vmul.f32 %v585, %v581
    %v588 = vadd.f32 %v575, %v587
    %s589 = scalar_lea.vmem %s0, 76
    %v590 = vld [vmem:[%s589] sm:$0xf]
    %v591 = vunpack.c.l.bf16 %v590
    %s592 = scalar_lea.vmem [#allocation12], 76
    %v593 = vld [vmem:[%s592] sm:$0xf]
    %v594 = vunpack.c.l.bf16 %v593
    %596 = vset.pattern.permute.xlu0 0
    %597 = vperm.xlu0 %596, %v591
    %v598 = vpop.permute.xlu0 %597
    %v600 = vmul.f32 %v598, %v594
    %v601 = vadd.f32 %v588, %v600
    %s602 = scalar_lea.vmem %s0, 80
    %v603 = vld [vmem:[%s602] sm:$0xf]
    %v604 = vunpack.c.l.bf16 %v603
    %s605 = scalar_lea.vmem [#allocation12], 80
    %v606 = vld [vmem:[%s605] sm:$0xf]
    %v607 = vunpack.c.l.bf16 %v606
    %609 = vset.pattern.permute.xlu0 0
    %610 = vperm.xlu0 %609, %v604
    %v611 = vpop.permute.xlu0 %610
    %v613 = vmul.f32 %v611, %v607
    %v614 = vadd.f32 %v601, %v613
    %s615 = scalar_lea.vmem %s0, 84
    %v616 = vld [vmem:[%s615] sm:$0xf]
    %v617 = vunpack.c.l.bf16 %v616
    %s618 = scalar_lea.vmem [#allocation12], 84
    %v619 = vld [vmem:[%s618] sm:$0xf]
    %v620 = vunpack.c.l.bf16 %v619
    %622 = vset.pattern.permute.xlu0 0
    %623 = vperm.xlu0 %622, %v617
    %v624 = vpop.permute.xlu0 %623
    %v626 = vmul.f32 %v624, %v620
    %v627 = vadd.f32 %v614, %v626
    %s628 = scalar_lea.vmem %s0, 88
    %v629 = vld [vmem:[%s628] sm:$0xf]
    %v630 = vunpack.c.l.bf16 %v629
    %s631 = scalar_lea.vmem [#allocation12], 88
    %v632 = vld [vmem:[%s631] sm:$0xf]
    %v633 = vunpack.c.l.bf16 %v632
    %635 = vset.pattern.permute.xlu0 0
    %636 = vperm.xlu0 %635, %v630
    %v637 = vpop.permute.xlu0 %636
    %v639 = vmul.f32 %v637, %v633
    %v640 = vadd.f32 %v627, %v639
    %s641 = scalar_lea.vmem %s0, 92
    %v642 = vld [vmem:[%s641] sm:$0xf]
    %v643 = vunpack.c.l.bf16 %v642
    %s644 = scalar_lea.vmem [#allocation12], 92
    %v645 = vld [vmem:[%s644] sm:$0xf]
    %v646 = vunpack.c.l.bf16 %v645
    %648 = vset.pattern.permute.xlu0 0
    %649 = vperm.xlu0 %648, %v643
    %v650 = vpop.permute.xlu0 %649
    %v652 = vmul.f32 %v650, %v646
    %v653 = vadd.f32 %v640, %v652
    %s654 = scalar_lea.vmem %s0, 96
    %v655 = vld [vmem:[%s654] sm:$0xf]
    %v656 = vunpack.c.l.bf16 %v655
    %s657 = scalar_lea.vmem [#allocation12], 96
    %v658 = vld [vmem:[%s657] sm:$0xf]
    %v659 = vunpack.c.l.bf16 %v658
    %661 = vset.pattern.permute.xlu0 0
    %662 = vperm.xlu0 %661, %v656
    %v663 = vpop.permute.xlu0 %662
    %v665 = vmul.f32 %v663, %v659
    %v666 = vadd.f32 %v653, %v665
    %s667 = scalar_lea.vmem %s0, 100
    %v668 = vld [vmem:[%s667] sm:$0xf]
    %v669 = vunpack.c.l.bf16 %v668
    %s670 = scalar_lea.vmem [#allocation12], 100
    %v671 = vld [vmem:[%s670] sm:$0xf]
    %v672 = vunpack.c.l.bf16 %v671
    %674 = vset.pattern.permute.xlu0 0
    %675 = vperm.xlu0 %674, %v669
    %v676 = vpop.permute.xlu0 %675
    %v678 = vmul.f32 %v676, %v672
    %v679 = vadd.f32 %v666, %v678
    %s680 = scalar_lea.vmem %s0, 104
    %v681 = vld [vmem:[%s680] sm:$0xf]
    %v682 = vunpack.c.l.bf16 %v681
    %s683 = scalar_lea.vmem [#allocation12], 104
    %v684 = vld [vmem:[%s683] sm:$0xf]
    %v685 = vunpack.c.l.bf16 %v684
    %687 = vset.pattern.permute.xlu0 0
    %688 = vperm.xlu0 %687, %v682
    %v689 = vpop.permute.xlu0 %688
    %v691 = vmul.f32 %v689, %v685
    %v692 = vadd.f32 %v679, %v691
    %s693 = scalar_lea.vmem %s0, 108
    %v694 = vld [vmem:[%s693] sm:$0xf]
    %v695 = vunpack.c.l.bf16 %v694
    %s696 = scalar_lea.vmem [#allocation12], 108
    %v697 = vld [vmem:[%s696] sm:$0xf]
    %v698 = vunpack.c.l.bf16 %v697
    %700 = vset.pattern.permute.xlu0 0
    %701 = vperm.xlu0 %700, %v695
    %v702 = vpop.permute.xlu0 %701
    %v704 = vmul.f32 %v702, %v698
    %v705 = vadd.f32 %v692, %v704
    %s706 = scalar_lea.vmem %s0, 112
    %v707 = vld [vmem:[%s706] sm:$0xf]
    %v708 = vunpack.c.l.bf16 %v707
    %s709 = scalar_lea.vmem [#allocation12], 112
    %v710 = vld [vmem:[%s709] sm:$0xf]
    %v711 = vunpack.c.l.bf16 %v710
    %713 = vset.pattern.permute.xlu0 0
    %714 = vperm.xlu0 %713, %v708
    %v715 = vpop.permute.xlu0 %714
    %v717 = vmul.f32 %v715, %v711
    %v718 = vadd.f32 %v705, %v717
    %s719 = scalar_lea.vmem %s0, 116
    %v720 = vld [vmem:[%s719] sm:$0xf]
    %v721 = vunpack.c.l.bf16 %v720
    %s722 = scalar_lea.vmem [#allocation12], 116
    %v723 = vld [vmem:[%s722] sm:$0xf]
    %v724 = vunpack.c.l.bf16 %v723
    %726 = vset.pattern.permute.xlu0 0
    %727 = vperm.xlu0 %726, %v721
    %v728 = vpop.permute.xlu0 %727
    %v730 = vmul.f32 %v728, %v724
    %v731 = vadd.f32 %v718, %v730
    %s732 = scalar_lea.vmem %s0, 120
    %v733 = vld [vmem:[%s732] sm:$0xf]
    %v734 = vunpack.c.l.bf16 %v733
    %s735 = scalar_lea.vmem [#allocation12], 120
    %v736 = vld [vmem:[%s735] sm:$0xf]
    %v737 = vunpack.c.l.bf16 %v736
    %739 = vset.pattern.permute.xlu0 0
    %740 = vperm.xlu0 %739, %v734
    %v741 = vpop.permute.xlu0 %740
    %v743 = vmul.f32 %v741, %v737
    %v744 = vadd.f32 %v731, %v743
    %s745 = scalar_lea.vmem %s0, 124
    %v746 = vld [vmem:[%s745] sm:$0xf]
    %v747 = vunpack.c.l.bf16 %v746
    %s748 = scalar_lea.vmem [#allocation12], 124
    %v749 = vld [vmem:[%s748] sm:$0xf]
    %v750 = vunpack.c.l.bf16 %v749
    %752 = vset.pattern.permute.xlu0 0
    %753 = vperm.xlu0 %752, %v747
    %v754 = vpop.permute.xlu0 %753
    %v756 = vmul.f32 %v754, %v750
    %v757 = vadd.f32 %v744, %v756
    %v758 = vld [vmem:[#allocation15] sm:$0xff]
    %v759 = vmul.f32 %v757, %v758
    %760 = vst [vmem:[%s6] sm:$0xff] %v759
    // Predicated region
    $region22: #{pr_network_forward.2} parent=1 // pred_check
      _
    $region23: #{pr_network_forward.2} parent=1 // pred_check_branch
      %762 = sbr.rel (0) target = $region25
    $region24: #{pr_network_forward.2} parent=1 // pred_region
      _
    $region25: #{pr_network_forward.2} parent=1 // pred_fallthru
      _
    // Predicated region
    $region26: #{pr_network_forward.2} parent=1 // pred_check
      _
    $region27: #{pr_network_forward.2} parent=1 // pred_check_branch
      %764 = sbr.rel (0) target = $region29
    $region28: #{pr_network_forward.2} parent=1 // pred_region
      _
    $region29: #{pr_network_forward.2} parent=1 // pred_fallthru
      _

</llo_original>
